<compile_context>
chip_gen: v6e
topology: v6e:2x2x1
jax: 0.10.0
libtpu: 0.0.40
codegen_flags: <defaults>
</compile_context>

<pallas_src>
import math

import jax
import jax.numpy as jnp
from jax.experimental import pallas as pl
from jax.experimental.pallas import tpu as pltpu


def gating_kernel(x_ref, w1_ref, b1_ref, w2_ref, b2_ref, o_ref):
    # x_ref: (B, task_dim) — whole batch resident in VMEM.
    x = x_ref[...].astype(jnp.float32)

    # fc1 + ReLU  (MXU matmul, VPU bias/relu)
    h = jnp.dot(x, w1_ref[...], preferred_element_type=jnp.float32) + b1_ref[...]
    h = jnp.maximum(h, 0.0)

    # fc2  (MXU matmul)
    logits = jnp.dot(h, w2_ref[...], preferred_element_type=jnp.float32) + b2_ref[...]

    # numerically-stable softmax over experts (last axis); EUP reciprocal
    m = jnp.max(logits, axis=-1, keepdims=True)
    e = jnp.exp(logits - m)
    denom = jnp.sum(e, axis=-1, keepdims=True)
    o_ref[...] = (e * pl.reciprocal(denom, approx=True)).astype(o_ref.dtype)


def gating_network(task_emb, params, top_k=1):
    """task_emb: (B, task_dim) f32 -> (B, num_experts) softmax gate weights."""
    if top_k != 1:
        # TODO(synk): top_k==2 masked-top-k branch needs an in-kernel topk/sort;
        # module default is top_k=1, which is what this kernel implements.
        raise NotImplementedError("only top_k=1 is implemented")
    B = task_emb.shape[0]
    E = params["w2"].shape[1]

    vmem = pl.BlockSpec(memory_space=pltpu.MemorySpace.VMEM)
    return pl.pallas_call(
        gating_kernel,
        out_shape=jax.ShapeDtypeStruct((B, E), jnp.float32),
        in_specs=[vmem, vmem, vmem, vmem, vmem],
        out_specs=vmem,
    )(task_emb, params["w1"], params["b1"], params["w2"], params["b2"])


def reference(task_emb, params):
    """Pure-JAX reference matching the PyTorch module (top_k=1)."""
    h = jnp.maximum(task_emb @ params["w1"] + params["b1"], 0.0)
    logits = h @ params["w2"] + params["b2"]
    return jax.nn.softmax(logits, axis=1)


def make_params(key, task_dim, hidden_dim, num_experts):
    """Deterministic nn.Linear-style init; weights pre-transposed for x @ W."""
    k1, k2, k3, k4 = jax.random.split(key, 4)
    s1 = 1.0 / math.sqrt(task_dim)
    s2 = 1.0 / math.sqrt(hidden_dim)
    return {
        "w1": jax.random.uniform(k1, (task_dim, hidden_dim), jnp.float32, -s1, s1),
        "b1": jax.random.uniform(k2, (1, hidden_dim), jnp.float32, -s1, s1),
        "w2": jax.random.uniform(k3, (hidden_dim, num_experts), jnp.float32, -s2, s2),
        "b2": jax.random.uniform(k4, (1, num_experts), jnp.float32, -s2, s2),
    }


if __name__ == "__main__":
    B, TASK_DIM, HIDDEN, NUM_EXPERTS = 2, 32, 32, 2
    key = jax.random.PRNGKey(0)
    kx, kp = jax.random.split(key)
    x = jax.random.normal(kx, (B, TASK_DIM), jnp.float32)
    params = make_params(kp, TASK_DIM, HIDDEN, NUM_EXPERTS)

    out = gating_network(x, params, top_k=1)
    out = jax.block_until_ready(out)

    ref = reference(x, params)
    assert out.shape == (B, NUM_EXPERTS)
    assert jnp.allclose(jnp.sum(out, axis=1), 1.0, atol=1e-3), "rows must sum to 1"
    assert jnp.allclose(out, ref, atol=1e-3, rtol=1e-3), "mismatch vs reference"
    print("KERNEL_OK")
</pallas_src>

<mosaic_0001>
module attributes {stable_mosaic.version = 11 : i64} {
  func.func @gating_kernel(%arg0: memref<2x32xf32, #tpu.memory_space<vmem>>, %arg1: memref<32x32xf32, #tpu.memory_space<vmem>>, %arg2: memref<1x32xf32, #tpu.memory_space<vmem>>, %arg3: memref<32x2xf32, #tpu.memory_space<vmem>>, %arg4: memref<1x2xf32, #tpu.memory_space<vmem>>, %arg5: memref<2x2xf32, #tpu.memory_space<vmem>>) attributes {dimension_semantics = [], scalar_prefetch = 0 : i64, scratch_operands = 0 : i64, tpu.core_type = #tpu.core_type<tc>} {
    %c0 = arith.constant 0 : index
    %c0_0 = arith.constant 0 : index
    %0 = vector.load %arg0[%c0, %c0_0] : memref<2x32xf32, #tpu.memory_space<vmem>>, vector<2x32xf32>
    %c0_1 = arith.constant 0 : index
    %c0_2 = arith.constant 0 : index
    %1 = vector.load %arg1[%c0_1, %c0_2] : memref<32x32xf32, #tpu.memory_space<vmem>>, vector<32x32xf32>
    %cst = arith.constant dense<0.000000e+00> : vector<2x32xf32>
    %2 = tpu.matmul %0, %1, %cst {dimension_numbers = #tpu.dot_dimension_numbers<[1], [0], [0], [1], [0, 0, 1, 1], [], []>} : vector<2x32xf32>, vector<32x32xf32>, vector<2x32xf32> -> vector<2x32xf32>
    %c0_3 = arith.constant 0 : index
    %c0_4 = arith.constant 0 : index
    %3 = vector.load %arg2[%c0_3, %c0_4] : memref<1x32xf32, #tpu.memory_space<vmem>>, vector<1x32xf32>
    %4 = vector.broadcast %3 : vector<1x32xf32> to vector<2x32xf32>
    %5 = arith.addf %2, %4 : vector<2x32xf32>
    %cst_5 = arith.constant 0.000000e+00 : f32
    %6 = vector.broadcast %cst_5 : f32 to vector<2x32xf32>
    %7 = arith.maximumf %5, %6 : vector<2x32xf32>
    %c0_6 = arith.constant 0 : index
    %c0_7 = arith.constant 0 : index
    %8 = vector.load %arg3[%c0_6, %c0_7] : memref<32x2xf32, #tpu.memory_space<vmem>>, vector<32x2xf32>
    %cst_8 = arith.constant dense<0.000000e+00> : vector<2x2xf32>
    %9 = tpu.matmul %7, %8, %cst_8 {dimension_numbers = #tpu.dot_dimension_numbers<[1], [0], [0], [1], [0, 0, 1, 1], [], []>} : vector<2x32xf32>, vector<32x2xf32>, vector<2x2xf32> -> vector<2x2xf32>
    %c0_9 = arith.constant 0 : index
    %c0_10 = arith.constant 0 : index
    %10 = vector.load %arg4[%c0_9, %c0_10] : memref<1x2xf32, #tpu.memory_space<vmem>>, vector<1x2xf32>
    %11 = vector.broadcast %10 : vector<1x2xf32> to vector<2x2xf32>
    %12 = arith.addf %9, %11 : vector<2x2xf32>
    %cst_11 = arith.constant dense<0xFF800000> : vector<2xf32>
    %13 = vector.multi_reduction <maximumf>, %12, %cst_11 [1] : vector<2x2xf32> to vector<2xf32>
    %14 = vector.shape_cast %13 : vector<2xf32> to vector<2x1xf32>
    %15 = vector.broadcast %14 : vector<2x1xf32> to vector<2x2xf32>
    %16 = arith.subf %12, %15 : vector<2x2xf32>
    %17 = math.exp %16 : vector<2x2xf32>
    %cst_12 = arith.constant dense<0.000000e+00> : vector<2xf32>
    %18 = vector.multi_reduction <add>, %17, %cst_12 [1] : vector<2x2xf32> to vector<2xf32>
    %19 = vector.shape_cast %18 : vector<2xf32> to vector<2x1xf32>
    %20 = tpu.reciprocal %19 {approx = true} : vector<2x1xf32> -> vector<2x1xf32>
    %21 = vector.broadcast %20 : vector<2x1xf32> to vector<2x2xf32>
    %22 = arith.mulf %17, %21 : vector<2x2xf32>
    %c0_13 = arith.constant 0 : index
    %c0_14 = arith.constant 0 : index
    %23 = vector.load %arg5[%c0_13, %c0_14] : memref<2x2xf32, #tpu.memory_space<vmem>>, vector<2x2xf32>
    tpu.vector_store %arg5[%c0_13, %c0_14], %22 {strides = array<i32>} : memref<2x2xf32, #tpu.memory_space<vmem>>, vector<2x2xf32>,
    return
  }
}

</mosaic_0001>

<llo_original>
// kernel: tpu_custom_call.1
$region0: #{tpu_custom_call.1}
  #allocation0 [shape = 'u32[]', space=smem, size = 0x4, offset = 0x4, fixed_abs, tag = 'smem constant byte address 0x4 - core index']
  #allocation1 [shape = 'u32[144,128]{1,0:T(1,128)}', space=vmem, size = 0x12000, scoped, tag = 'internal scratch']
  %s0 = inlined_call_operand.vmem [shape: f32[2,32], index: 0, kind: input, shape index: {}]
  %s1 = inlined_call_operand.vmem [shape: f32[32,32], index: 1, kind: input, shape index: {}]
  %s2 = inlined_call_operand.vmem [shape: f32[1,32], index: 2, kind: input, shape index: {}]
  %s3 = inlined_call_operand.vmem [shape: f32[32,2], index: 3, kind: input, shape index: {}]
  %s4 = inlined_call_operand.vmem [shape: f32[1,2], index: 4, kind: input, shape index: {}]
  %s5 = inlined_call_operand.hbm [shape: f32[2,2], index: 5, kind: output, shape index: {}]
  %s6 = sld [smem:[#allocation0]]
  $region30: #{tpu_custom_call.1} parent=0
    _
  %s8 = ssub.s32 1, %s6
  %s9 = scalar_select 0, %s8, %s6
  $region1: #{tpu_custom_call.1} parent=0
    #allocation2 [shape = 'u8[1024]{0}', space=vmem, size = 0x400, scoped, tag = 'output window, operand 0, single buffered']
    #allocation3 [shape = 's32[1]{0}', space=sflag, size = 0x4, scoped, tag = 'scoped memory for tpu_custom_call.1']
    %10 = vsyncpa [#allocation3], 0
    // Predicated region
    $region2: #{tpu_custom_call.1} parent=1 // pred_check
      _
    $region3: #{tpu_custom_call.1} parent=1 // pred_check_branch
      %12 = sbr.rel (0) target = $region5
    $region4: #{tpu_custom_call.1} parent=1 // pred_region
      _
    $region5: #{tpu_custom_call.1} parent=1 // pred_fallthru
      _
    // Predicated region
    $region6: #{tpu_custom_call.1} parent=1 // pred_check
      _
    $region7: #{tpu_custom_call.1} parent=1 // pred_check_branch
      %14 = sbr.rel (0) target = $region9
    $region8: #{tpu_custom_call.1} parent=1 // pred_region
      _
    $region9: #{tpu_custom_call.1} parent=1 // pred_fallthru
      _
    // Predicated region
    $region10: #{tpu_custom_call.1} parent=1 // pred_check
      _
    $region11: #{tpu_custom_call.1} parent=1 // pred_check_branch
      %16 = sbr.rel (0) target = $region13
    $region12: #{tpu_custom_call.1} parent=1 // pred_region
      _
    $region13: #{tpu_custom_call.1} parent=1 // pred_fallthru
      _
    // Predicated region
    $region14: #{tpu_custom_call.1} parent=1 // pred_check
      _
    $region15: #{tpu_custom_call.1} parent=1 // pred_check_branch
      %18 = sbr.rel (0) target = $region17
    $region16: #{tpu_custom_call.1} parent=1 // pred_region
      _
    $region17: #{tpu_custom_call.1} parent=1 // pred_fallthru
      _
    // Predicated region
    $region18: #{tpu_custom_call.1} parent=1 // pred_check
      _
    $region19: #{tpu_custom_call.1} parent=1 // pred_check_branch
      %20 = sbr.rel (0) target = $region21
    $region20: #{tpu_custom_call.1} parent=1 // pred_region
      _
    $region21: #{tpu_custom_call.1} parent=1 // pred_fallthru
      _
    %v21 = vld [vmem:[%s0] sm:$0x3]
    %v22 = vld [vmem:[%s1] sm:$0xff]
    %v23 = vld [vmem:[%s1 + $0x8] sm:$0xff]
    %v24 = vld [vmem:[%s1 + $0x10] sm:$0xff]
    %v25 = vld [vmem:[%s1 + $0x18] sm:$0xff]
    %v26 = vld [vmem:[%s2] sm:$0x1]
    %v28 = vlaneseq
    %v29 = vshrl.u32 %v28, 7
    %v30 = vsub.s32 0, %v29
    %v31 = vrot.slane %v26, %v30
    %vm33 = vcmask 261120
    %v35 = vsel %vm33, %v21, 0
    %37 = vmatprep.subr.mxu0 0.0
    %38 = vmatpush1.msra.mxu0 0.0
    %39 = vmatprep.subr.mxu0 0.0
    %40 = vmatpush1.msra.mxu0 0.0
    %41 = vmatprep.subr.mxu0 0.0
    %42 = vmatpush1.msra.mxu0 0.0
    %43 = vmatprep.subr.mxu0 0.0
    %44 = vmatpush1.msra.mxu0 0.0
    %45 = vmatprep.subr.mxu0 0.0
    %46 = vmatpush1.msra.mxu0 0.0
    %47 = vmatprep.subr.mxu0 0.0
    %48 = vmatpush1.msra.mxu0 0.0
    %49 = vmatprep.subr.mxu0 0.0
    %50 = vmatpush1.msra.mxu0 0.0
    %51 = vmatprep.subr.mxu0 0.0
    %52 = vmatpush1.msra.mxu0 0.0
    %53 = vmatprep.subr.mxu0 0.0
    %54 = vmatpush1.msra.mxu0 0.0
    %55 = vmatprep.subr.mxu0 0.0
    %56 = vmatpush1.msra.mxu0 0.0
    %57 = vmatprep.subr.mxu0 0.0
    %58 = vmatpush1.msra.mxu0 0.0
    %59 = vmatprep.subr.mxu0 0.0
    %60 = vmatpush1.msra.mxu0 0.0
    %61 = vmatprep.subr.mxu0 0.0
    %62 = vmatpush1.msra.mxu0 %v25
    %63 = vmatprep.subr.mxu0 0.0
    %64 = vmatpush1.msra.mxu0 %v24
    %65 = vmatprep.subr.mxu0 0.0
    %66 = vmatpush1.msra.mxu0 %v23
    %67 = vmatprep.subr.mxu0 0.0
    %68 = vmatpush1.msra.mxu0 %v22
    %69 = vmatprep.subr.mxu0 0.0
    %70 = vmatpush2.msra.mxu0 0.0
    %71 = vmatprep.subr.mxu0 0.0
    %72 = vmatpush2.msra.mxu0 0.0
    %73 = vmatprep.subr.mxu0 0.0
    %74 = vmatpush2.msra.mxu0 0.0
    %75 = vmatprep.subr.mxu0 0.0
    %76 = vmatpush2.msra.mxu0 0.0
    %77 = vmatprep.subr.mxu0 0.0
    %78 = vmatpush2.msra.mxu0 0.0
    %79 = vmatprep.subr.mxu0 0.0
    %80 = vmatpush2.msra.mxu0 0.0
    %81 = vmatprep.subr.mxu0 0.0
    %82 = vmatpush2.msra.mxu0 0.0
    %83 = vmatprep.subr.mxu0 0.0
    %84 = vmatpush2.msra.mxu0 0.0
    %85 = vmatprep.subr.mxu0 0.0
    %86 = vmatpush2.msra.mxu0 0.0
    %87 = vmatprep.subr.mxu0 0.0
    %88 = vmatpush2.msra.mxu0 0.0
    %89 = vmatprep.subr.mxu0 0.0
    %90 = vmatpush2.msra.mxu0 0.0
    %91 = vmatprep.subr.mxu0 0.0
    %92 = vmatpush2.msra.mxu0 0.0
    %93 = vmatprep.subr.mxu0 0.0
    %94 = vmatpush2.msra.mxu0 0.0
    %95 = vmatprep.subr.mxu0 0.0
    %96 = vmatpush2.msra.mxu0 0.0
    %97 = vmatprep.subr.mxu0 0.0
    %98 = vmatpush2.msra.mxu0 0.0
    %99 = vmatprep.subr.mxu0 0.0
    %100 = vmatpush2.msra.mxu0 0.0
    %101 = vmatprep.mubr.f32.mxu0 0.0
    %102 = vmatmul.mubr.f32.gmra.mxu0 %v35
    %v103 = vpop.f32.mrf.mxu0
    %v104 = vadd.f32 %v31, %v103
    %v105 = vpop.f32.mrf.mxu0
    %106 = vdwg.mxu0
    %v107 = vmax.f32 %v104, 0.0
    %v108 = vld [vmem:[%s3] sm:$0xff]
    %v109 = vld [vmem:[%s3 + $0x8] sm:$0xff]
    %v110 = vld [vmem:[%s3 + $0x10] sm:$0xff]
    %v111 = vld [vmem:[%s3 + $0x18] sm:$0xff]
    %v112 = vld [vmem:[%s4] sm:$0x1]
    %v114 = vlaneseq
    %v115 = vshrl.u32 %v114, 7
    %v116 = vsub.s32 0, %v115
    %v117 = vrot.slane %v112, %v116
    %v120 = vsel %vm33, %v107, 0
    %122 = vmatprep.subr.mxu0 0.0
    %123 = vmatpush1.msra.mxu0 0.0
    %124 = vmatprep.subr.mxu0 0.0
    %125 = vmatpush1.msra.mxu0 0.0
    %126 = vmatprep.subr.mxu0 0.0
    %127 = vmatpush1.msra.mxu0 0.0
    %128 = vmatprep.subr.mxu0 0.0
    %129 = vmatpush1.msra.mxu0 0.0
    %130 = vmatprep.subr.mxu0 0.0
    %131 = vmatpush1.msra.mxu0 0.0
    %132 = vmatprep.subr.mxu0 0.0
    %133 = vmatpush1.msra.mxu0 0.0
    %134 = vmatprep.subr.mxu0 0.0
    %135 = vmatpush1.msra.mxu0 0.0
    %136 = vmatprep.subr.mxu0 0.0
    %137 = vmatpush1.msra.mxu0 0.0
    %138 = vmatprep.subr.mxu0 0.0
    %139 = vmatpush1.msra.mxu0 0.0
    %140 = vmatprep.subr.mxu0 0.0
    %141 = vmatpush1.msra.mxu0 0.0
    %142 = vmatprep.subr.mxu0 0.0
    %143 = vmatpush1.msra.mxu0 0.0
    %144 = vmatprep.subr.mxu0 0.0
    %145 = vmatpush1.msra.mxu0 0.0
    %146 = vmatprep.subr.mxu0 0.0
    %147 = vmatpush1.msra.mxu0 %v111
    %148 = vmatprep.subr.mxu0 0.0
    %149 = vmatpush1.msra.mxu0 %v110
    %150 = vmatprep.subr.mxu0 0.0
    %151 = vmatpush1.msra.mxu0 %v109
    %152 = vmatprep.subr.mxu0 0.0
    %153 = vmatpush1.msra.mxu0 %v108
    %154 = vmatprep.subr.mxu0 0.0
    %155 = vmatpush2.msra.mxu0 0.0
    %156 = vmatprep.subr.mxu0 0.0
    %157 = vmatpush2.msra.mxu0 0.0
    %158 = vmatprep.subr.mxu0 0.0
    %159 = vmatpush2.msra.mxu0 0.0
    %160 = vmatprep.subr.mxu0 0.0
    %161 = vmatpush2.msra.mxu0 0.0
    %162 = vmatprep.subr.mxu0 0.0
    %163 = vmatpush2.msra.mxu0 0.0
    %164 = vmatprep.subr.mxu0 0.0
    %165 = vmatpush2.msra.mxu0 0.0
    %166 = vmatprep.subr.mxu0 0.0
    %167 = vmatpush2.msra.mxu0 0.0
    %168 = vmatprep.subr.mxu0 0.0
    %169 = vmatpush2.msra.mxu0 0.0
    %170 = vmatprep.subr.mxu0 0.0
    %171 = vmatpush2.msra.mxu0 0.0
    %172 = vmatprep.subr.mxu0 0.0
    %173 = vmatpush2.msra.mxu0 0.0
    %174 = vmatprep.subr.mxu0 0.0
    %175 = vmatpush2.msra.mxu0 0.0
    %176 = vmatprep.subr.mxu0 0.0
    %177 = vmatpush2.msra.mxu0 0.0
    %178 = vmatprep.subr.mxu0 0.0
    %179 = vmatpush2.msra.mxu0 0.0
    %180 = vmatprep.subr.mxu0 0.0
    %181 = vmatpush2.msra.mxu0 0.0
    %182 = vmatprep.subr.mxu0 0.0
    %183 = vmatpush2.msra.mxu0 0.0
    %184 = vmatprep.subr.mxu0 0.0
    %185 = vmatpush2.msra.mxu0 0.0
    %186 = vmatprep.mubr.f32.mxu0 0.0
    %187 = vmatmul.mubr.f32.gmra.mxu0 %v120
    %v188 = vpop.f32.mrf.mxu0
    %v189 = vadd.f32 %v117, %v188
    %v190 = vpop.f32.mrf.mxu0
    %191 = vdwg.mxu0
    %vm192 = vcmask 9216
    %v193 = vsel %vm192, %v189, -inf
    %194 = vmax.xlane.f32.xlu0 %v193
    %v195 = vpop.xlane.xlu0 %194
    %v196 = vsub.f32 %v189, %v195
    %v197 = vmul.f32 %v196, 1.442695
    %v198 = vpow.pop %v197
    %v199 = vsel %vm192, %v198, 0.0
    %200 = vadd.xlane.f32.xlu0 %v199
    %v201 = vpop.xlane.xlu0 %200
    %v202 = vrcp.pop %v201
    %v203 = vmul.f32 %v198, %v202
    %204 = vst.msk [vmem:[#allocation2] sm:$0x3] %vm192, %v203
    // Predicated region
    $region22: #{tpu_custom_call.1} parent=1 // pred_check
      _
    $region23: #{tpu_custom_call.1} parent=1 // pred_check_branch
      %206 = sbr.rel (0) target = $region25
    $region24: #{tpu_custom_call.1} parent=1 // pred_region
      %s208 = ssub.s32 32, 32
      %209 = vsyncadd [#allocation3], %s208
      %s211 = sshll.u32 [#allocation2], 4
      %s212 = int_to_ptr.vmem [resolvable:$true] %s211
      %214 = dma.vmem_to_hbm [thread:$0]  %s212, 32, %s5, [#allocation3]
    $region25: #{tpu_custom_call.1} parent=1 // pred_fallthru
      _
    // Predicated region
    $region26: #{tpu_custom_call.1} parent=1 // pred_check
      _
    $region27: #{tpu_custom_call.1} parent=1 // pred_check_branch
      %216 = sbr.rel (0) target = $region29
    $region28: #{tpu_custom_call.1} parent=1 // pred_region
      %217 = dma.done [#allocation3], 32
    $region29: #{tpu_custom_call.1} parent=1 // pred_fallthru
      _
    %218 = vsyncpa [#allocation3], 1

</llo_original>
